<compile_context>
chip_gen: v7x
topology: tpu7x:2x2x1
jax: 0.10.0
libtpu: 0.0.40
codegen_flags: <defaults>
</compile_context>

<pallas_src>
import jax
import jax.numpy as jnp
from jax.experimental import pallas as pl
from jax.experimental.pallas import tpu as pltpu


def _round_up(x, m):
    return ((x + m - 1) // m) * m


# ---------------------------------------------------------------------------
# Prologue kernel (per row tile): the tiny-K (F_in) node transforms.
#   H = x @ W_l          -> bf16, feeds the big A @ H contraction
#   S = x @ W_r + b      -> f32, self/root term + bias, added once at the end
# ---------------------------------------------------------------------------
def transform_kernel(x_ref, wl_ref, wr_ref, b_ref, h_ref, s_ref):
    x = x_ref[...]
    h = jnp.dot(x, wl_ref[...], preferred_element_type=jnp.float32)
    s = jnp.dot(x, wr_ref[...], preferred_element_type=jnp.float32) + b_ref[...]
    h_ref[...] = h.astype(h_ref.dtype)
    s_ref[...] = s


# ---------------------------------------------------------------------------
# Main kernel: out[i] = sum_k A[i, k] @ H[k]  + S[i]
# bf16 MXU operands, f32 VMEM accumulator, init/finalize via pl.when.
# ---------------------------------------------------------------------------
def aggregate_kernel(a_ref, h_ref, s_ref, o_ref, acc_ref):
    k = pl.program_id(1)

    @pl.when(k == 0)
    def _():
        acc_ref[...] = jnp.zeros_like(acc_ref)

    acc_ref[...] += jnp.dot(a_ref[...], h_ref[...],
                            preferred_element_type=jnp.float32)

    @pl.when(k == pl.num_programs(1) - 1)
    def _():
        o_ref[...] = (acc_ref[...] + s_ref[...]).astype(o_ref.dtype)


def top_to_bottom_layer_forward(embedding, edge_index, w_l, w_r, b_l, *,
                                tile=512):
    """SAGEConv(embedding, edge_index) forward pass (mean aggregation).

    embedding : [N, F_in] float32
    edge_index: [2, E] int32  (row 0 = source/top node, row 1 = target/bottom)
    w_l, w_r  : [F_in, F_out] float32   (lin_l.weight.T / lin_r.weight.T)
    b_l       : [F_out] float32         (lin_l bias)
    returns   : [N, F_out] float32
    """
    n, f_in = embedding.shape
    f_out = w_l.shape[1]

    # ---- padded sizes: lane-dense F_out, (8,128)-aligned N tiles ----------
    f_pad = _round_up(f_out, 128)
    tile = min(tile, _round_up(n, 128))     # tile is a multiple of 128
    n_pad = _round_up(n, tile)
    n_i = n_pad // tile                     # row tiles (parallel)
    n_k = n_pad // tile                     # contraction tiles (arbitrary)

    # ---- glue: dense row-normalized mean-aggregation matrix ---------------
    src = edge_index[0]
    tgt = edge_index[1]
    adj = jnp.zeros((n, n), jnp.float32).at[tgt, src].add(1.0)
    deg = jnp.sum(adj, axis=1, keepdims=True)
    a_mean = jnp.where(deg > 0, adj / jnp.maximum(deg, 1.0), 0.0)
    # TODO(synk): for real dehnn graphs (E << N^2) replace this dense O(N^2)
    # adjacency with a scalar-prefetch CSR gather / segment-mean Pallas path.

    a_pad = jnp.zeros((n_pad, n_pad), jnp.bfloat16).at[:n, :n].set(
        a_mean.astype(jnp.bfloat16))
    x_pad = jnp.zeros((n_pad, f_in), jnp.float32).at[:n, :].set(embedding)
    wl_pad = jnp.zeros((f_in, f_pad), jnp.float32).at[:, :f_out].set(w_l)
    wr_pad = jnp.zeros((f_in, f_pad), jnp.float32).at[:, :f_out].set(w_r)
    b_pad = jnp.zeros((1, f_pad), jnp.float32).at[0, :f_out].set(b_l)

    # ---- prologue: H = x @ W_l (bf16), S = x @ W_r + b (f32) --------------
    h_pad, s_pad = pl.pallas_call(
        transform_kernel,
        out_shape=(jax.ShapeDtypeStruct((n_pad, f_pad), jnp.bfloat16),
                   jax.ShapeDtypeStruct((n_pad, f_pad), jnp.float32)),
        grid=(n_i,),
        in_specs=[
            pl.BlockSpec((tile, f_in), lambda i: (i, 0)),
            pl.BlockSpec((f_in, f_pad), lambda i: (0, 0)),
            pl.BlockSpec((f_in, f_pad), lambda i: (0, 0)),
            pl.BlockSpec((1, f_pad), lambda i: (0, 0)),
        ],
        out_specs=(pl.BlockSpec((tile, f_pad), lambda i: (i, 0)),
                   pl.BlockSpec((tile, f_pad), lambda i: (i, 0))),
        compiler_params=pltpu.CompilerParams(
            dimension_semantics=("parallel",)),
    )(x_pad, wl_pad, wr_pad, b_pad)

    # ---- main: out = A_mean @ H + S  (tiled N x N x F_pad contraction) ----
    cost = pl.CostEstimate(
        flops=2 * n_pad * n_pad * f_pad,
        transcendentals=0,
        bytes_accessed=(n_pad * n_pad * 2            # A (bf16)
                        + n_i * n_pad * f_pad * 2    # H (bf16, reloaded per i)
                        + n_pad * f_pad * 4          # S (f32)
                        + n_pad * f_pad * 4),        # out (f32)
    )
    out_pad = pl.pallas_call(
        aggregate_kernel,
        out_shape=jax.ShapeDtypeStruct((n_pad, f_pad), jnp.float32),
        grid_spec=pltpu.PrefetchScalarGridSpec(
            num_scalar_prefetch=0,
            grid=(n_i, n_k),
            in_specs=[
                pl.BlockSpec((tile, tile), lambda i, k: (i, k)),    # A block
                pl.BlockSpec((tile, f_pad), lambda i, k: (k, 0)),   # H block
                pl.BlockSpec((tile, f_pad), lambda i, k: (i, 0)),   # S block
            ],
            out_specs=pl.BlockSpec((tile, f_pad), lambda i, k: (i, 0)),
            scratch_shapes=[pltpu.VMEM((tile, f_pad), jnp.float32)],
        ),
        compiler_params=pltpu.CompilerParams(
            dimension_semantics=("parallel", "arbitrary")),
        cost_estimate=cost,
    )(a_pad, h_pad, s_pad)

    return out_pad[:n, :f_out]


if __name__ == "__main__":
    key = jax.random.PRNGKey(0)
    k_emb, k_edge_s, k_edge_t, k_wl, k_wr = jax.random.split(key, 5)

    N = 16        # number of nodes
    E = 40        # number of top->bottom edges
    F_IN = 32     # in_size
    F_OUT = 32    # out_size

    embedding = jax.random.normal(k_emb, (N, F_IN), dtype=jnp.float32)
    edge_index = jnp.stack(
        [
            jax.random.randint(k_edge_s, (E,), 0, N, dtype=jnp.int32),
            jax.random.randint(k_edge_t, (E,), 0, N, dtype=jnp.int32),
        ],
        axis=0,
    )

    # Deterministic parameter init (glorot-uniform-ish), bias zero.
    lim = (6.0 / (F_IN + F_OUT)) ** 0.5
    w_l = jax.random.uniform(k_wl, (F_IN, F_OUT), jnp.float32, -lim, lim)
    w_r = jax.random.uniform(k_wr, (F_IN, F_OUT), jnp.float32, -lim, lim)
    b_l = jnp.zeros((F_OUT,), jnp.float32)

    out = top_to_bottom_layer_forward(embedding, edge_index, w_l, w_r, b_l)
    out = jax.block_until_ready(out)

    # Pure-JAX f32 reference of the SAGE-mean semantics.
    adj = jnp.zeros((N, N), jnp.float32).at[edge_index[1], edge_index[0]].add(1.0)
    deg = jnp.sum(adj, axis=1, keepdims=True)
    a_mean = jnp.where(deg > 0, adj / jnp.maximum(deg, 1.0), 0.0)
    ref = (a_mean @ embedding) @ w_l + embedding @ w_r + b_l[None, :]

    # bf16 MXU operands (A, H) with f32 accumulation -> loosened tolerance.
    err = float(jnp.max(jnp.abs(out - ref)))
    assert jnp.allclose(out, ref, atol=3e-2, rtol=3e-2), err

    print("KERNEL_OK")
</pallas_src>

<mosaic_0001>
module attributes {stable_mosaic.version = 11 : i64} {
  func.func @transform_kernel(%arg0: i32, %arg1: memref<128x32xf32, #tpu.memory_space<vmem>>, %arg2: memref<32x128xf32, #tpu.memory_space<vmem>>, %arg3: memref<32x128xf32, #tpu.memory_space<vmem>>, %arg4: memref<1x128xf32, #tpu.memory_space<vmem>>, %arg5: memref<128x128xbf16, #tpu.memory_space<vmem>>, %arg6: memref<128x128xf32, #tpu.memory_space<vmem>>) attributes {dimension_semantics = [#tpu.dimension_semantics<parallel>], iteration_bounds = array<i64: 1>, scalar_prefetch = 0 : i64, scratch_operands = 0 : i64, tpu.core_type = #tpu.core_type<tc>, window_params = [{transform_indices = @transform_0, window_bounds = array<i64: 128, 32>}, {pipeline_mode = #tpu.pipeline_mode<synchronous>, transform_indices = @transform_1, window_bounds = array<i64: 32, 128>}, {pipeline_mode = #tpu.pipeline_mode<synchronous>, transform_indices = @transform_2, window_bounds = array<i64: 32, 128>}, {pipeline_mode = #tpu.pipeline_mode<synchronous>, transform_indices = @transform_3, window_bounds = array<i64: 1, 128>}, {transform_indices = @transform_4, window_bounds = array<i64: 128, 128>}, {transform_indices = @transform_5, window_bounds = array<i64: 128, 128>}]} {
    %c0 = arith.constant 0 : index
    %c0_0 = arith.constant 0 : index
    %0 = vector.load %arg1[%c0, %c0_0] : memref<128x32xf32, #tpu.memory_space<vmem>>, vector<128x32xf32>
    %c0_1 = arith.constant 0 : index
    %c0_2 = arith.constant 0 : index
    %1 = vector.load %arg2[%c0_1, %c0_2] : memref<32x128xf32, #tpu.memory_space<vmem>>, vector<32x128xf32>
    %cst = arith.constant dense<0.000000e+00> : vector<128x128xf32>
    %2 = tpu.matmul %0, %1, %cst {dimension_numbers = #tpu.dot_dimension_numbers<[1], [0], [0], [1], [0, 0, 1, 1], [], []>} : vector<128x32xf32>, vector<32x128xf32>, vector<128x128xf32> -> vector<128x128xf32>
    %c0_3 = arith.constant 0 : index
    %c0_4 = arith.constant 0 : index
    %3 = vector.load %arg3[%c0_3, %c0_4] : memref<32x128xf32, #tpu.memory_space<vmem>>, vector<32x128xf32>
    %cst_5 = arith.constant dense<0.000000e+00> : vector<128x128xf32>
    %4 = tpu.matmul %0, %3, %cst_5 {dimension_numbers = #tpu.dot_dimension_numbers<[1], [0], [0], [1], [0, 0, 1, 1], [], []>} : vector<128x32xf32>, vector<32x128xf32>, vector<128x128xf32> -> vector<128x128xf32>
    %c0_6 = arith.constant 0 : index
    %c0_7 = arith.constant 0 : index
    %5 = vector.load %arg4[%c0_6, %c0_7] : memref<1x128xf32, #tpu.memory_space<vmem>>, vector<1x128xf32>
    %6 = vector.broadcast %5 : vector<1x128xf32> to vector<128x128xf32>
    %7 = arith.addf %4, %6 : vector<128x128xf32>
    %8 = arith.truncf %2 : vector<128x128xf32> to vector<128x128xbf16>
    %c0_8 = arith.constant 0 : index
    %c0_9 = arith.constant 0 : index
    %9 = vector.load %arg5[%c0_8, %c0_9] : memref<128x128xbf16, #tpu.memory_space<vmem>>, vector<128x128xbf16>
    tpu.vector_store %arg5[%c0_8, %c0_9], %8 {strides = array<i32>} : memref<128x128xbf16, #tpu.memory_space<vmem>>, vector<128x128xbf16>,
    %c0_10 = arith.constant 0 : index
    %c0_11 = arith.constant 0 : index
    %10 = vector.load %arg6[%c0_10, %c0_11] : memref<128x128xf32, #tpu.memory_space<vmem>>, vector<128x128xf32>
    tpu.vector_store %arg6[%c0_10, %c0_11], %7 {strides = array<i32>} : memref<128x128xf32, #tpu.memory_space<vmem>>, vector<128x128xf32>,
    return
  }
  func.func @transform_0(%arg0: i32) -> (i32, i32) {
    %c0_i32 = arith.constant 0 : i32
    %c0_i32_0 = arith.constant 0 : i32
    return %arg0, %c0_i32 : i32, i32
  }
  func.func @transform_1(%arg0: i32) -> (i32, i32) {
    %c0_i32 = arith.constant 0 : i32
    %c0_i32_0 = arith.constant 0 : i32
    %c0_i32_1 = arith.constant 0 : i32
    return %c0_i32, %c0_i32_0 : i32, i32
  }
  func.func @transform_2(%arg0: i32) -> (i32, i32) {
    %c0_i32 = arith.constant 0 : i32
    %c0_i32_0 = arith.constant 0 : i32
    %c0_i32_1 = arith.constant 0 : i32
    return %c0_i32, %c0_i32_0 : i32, i32
  }
  func.func @transform_3(%arg0: i32) -> (i32, i32) {
    %c0_i32 = arith.constant 0 : i32
    %c0_i32_0 = arith.constant 0 : i32
    %c0_i32_1 = arith.constant 0 : i32
    return %c0_i32, %c0_i32_0 : i32, i32
  }
  func.func @transform_4(%arg0: i32) -> (i32, i32) {
    %c0_i32 = arith.constant 0 : i32
    %c0_i32_0 = arith.constant 0 : i32
    return %arg0, %c0_i32 : i32, i32
  }
  func.func @transform_5(%arg0: i32) -> (i32, i32) {
    %c0_i32 = arith.constant 0 : i32
    %c0_i32_0 = arith.constant 0 : i32
    return %arg0, %c0_i32 : i32, i32
  }
}

</mosaic_0001>

<llo_original>
// kernel: tpu_custom_call.1
$region0: #{tpu_custom_call.1}
  #allocation0 [shape = 'u32[]', space=smem, size = 0x4, offset = 0x4, fixed_abs, tag = 'smem constant byte address 0x4 - core index']
  #allocation1 [shape = 'u32[144,128]{1,0:T(1,128)}', space=vmem, size = 0x12000, scoped, tag = 'internal scratch']
  %s0 = inlined_call_operand.vmem [shape: f32[128,32], index: 0, kind: input, shape index: {}]
  %s1 = inlined_call_operand.vmem [shape: f32[32,128], index: 1, kind: input, shape index: {}]
  %s2 = inlined_call_operand.vmem [shape: f32[32,128], index: 2, kind: input, shape index: {}]
  %s3 = inlined_call_operand.vmem [shape: f32[1,128], index: 3, kind: input, shape index: {}]
  %s4 = inlined_call_operand.hbm [shape: bf16[128,128], index: 4, kind: output, shape index: {0}]
  %s5 = inlined_call_operand.hbm [shape: f32[128,128], index: 5, kind: output, shape index: {1}]
  %6 = xla_tuple %s4, %s5
  %s7 = sld [smem:[#allocation0]]
  $region34: #{tpu_custom_call.1} parent=0
    _
  %s9 = ssub.s32 1, %s7
  %s10 = scalar_select 0, %s9, %s7
  $region1: #{tpu_custom_call.1} parent=0
    #allocation2 [shape = 'u8[32768]{0}', space=vmem, size = 0x8000, scoped, tag = 'output window, operand 0, single buffered']
    #allocation3 [shape = 's32[1]{0}', space=sflag, size = 0x4, scoped, tag = 'scoped memory for tpu_custom_call.1']
    #allocation4 [shape = 'u8[65536]{0}', space=vmem, size = 0x10000, scoped, tag = 'output window, operand 1, single buffered']
    #allocation5 [shape = 's32[1]{0}', space=sflag, size = 0x4, scoped, tag = 'scoped memory for tpu_custom_call.1']
    %11 = vsyncpa [#allocation3], 0
    %12 = vsyncpa [#allocation5], 0
    // Predicated region
    $region2: #{tpu_custom_call.1} parent=1 // pred_check
      _
    $region3: #{tpu_custom_call.1} parent=1 // pred_check_branch
      %14 = sbr.rel (0) target = $region5
    $region4: #{tpu_custom_call.1} parent=1 // pred_region
      _
    $region5: #{tpu_custom_call.1} parent=1 // pred_fallthru
      _
    // Predicated region
    $region6: #{tpu_custom_call.1} parent=1 // pred_check
      _
    $region7: #{tpu_custom_call.1} parent=1 // pred_check_branch
      %16 = sbr.rel (0) target = $region9
    $region8: #{tpu_custom_call.1} parent=1 // pred_region
      _
    $region9: #{tpu_custom_call.1} parent=1 // pred_fallthru
      _
    // Predicated region
    $region10: #{tpu_custom_call.1} parent=1 // pred_check
      _
    $region11: #{tpu_custom_call.1} parent=1 // pred_check_branch
      %18 = sbr.rel (0) target = $region13
    $region12: #{tpu_custom_call.1} parent=1 // pred_region
      _
    $region13: #{tpu_custom_call.1} parent=1 // pred_fallthru
      _
    // Predicated region
    $region14: #{tpu_custom_call.1} parent=1 // pred_check
      _
    $region15: #{tpu_custom_call.1} parent=1 // pred_check_branch
      %20 = sbr.rel (0) target = $region17
    $region16: #{tpu_custom_call.1} parent=1 // pred_region
      _
    $region17: #{tpu_custom_call.1} parent=1 // pred_fallthru
      _
    %v21 = vld [vmem:[%s0] sm:$0xff]
    %v22 = vld [vmem:[%s0 + $0x8] sm:$0xff]
    %v23 = vld [vmem:[%s0 + $0x10] sm:$0xff]
    %v24 = vld [vmem:[%s0 + $0x18] sm:$0xff]
    %v25 = vld [vmem:[%s0 + $0x20] sm:$0xff]
    %v26 = vld [vmem:[%s0 + $0x28] sm:$0xff]
    %v27 = vld [vmem:[%s0 + $0x30] sm:$0xff]
    %v28 = vld [vmem:[%s0 + $0x38] sm:$0xff]
    %v29 = vld [vmem:[%s0 + $0x40] sm:$0xff]
    %v30 = vld [vmem:[%s0 + $0x48] sm:$0xff]
    %v31 = vld [vmem:[%s0 + $0x50] sm:$0xff]
    %v32 = vld [vmem:[%s0 + $0x58] sm:$0xff]
    %v33 = vld [vmem:[%s0 + $0x60] sm:$0xff]
    %v34 = vld [vmem:[%s0 + $0x68] sm:$0xff]
    %v35 = vld [vmem:[%s0 + $0x70] sm:$0xff]
    %v36 = vld [vmem:[%s0 + $0x78] sm:$0xff]
    %v37 = vld [vmem:[%s1] sm:$0xff]
    %v38 = vld [vmem:[%s1 + $0x8] sm:$0xff]
    %v39 = vld [vmem:[%s1 + $0x10] sm:$0xff]
    %v40 = vld [vmem:[%s1 + $0x18] sm:$0xff]
    %vm41 = vcmask 261120
    %v43 = vsel %vm41, %v21, 0
    %v46 = vsel %vm41, %v22, 0
    %v49 = vsel %vm41, %v23, 0
    %v52 = vsel %vm41, %v24, 0
    %v55 = vsel %vm41, %v25, 0
    %v58 = vsel %vm41, %v26, 0
    %v61 = vsel %vm41, %v27, 0
    %v64 = vsel %vm41, %v28, 0
    %v67 = vsel %vm41, %v29, 0
    %v70 = vsel %vm41, %v30, 0
    %v73 = vsel %vm41, %v31, 0
    %v76 = vsel %vm41, %v32, 0
    %v79 = vsel %vm41, %v33, 0
    %v82 = vsel %vm41, %v34, 0
    %v85 = vsel %vm41, %v35, 0
    %v88 = vsel %vm41, %v36, 0
    %90 = vmatprep.subr.mxu0 0.0
    %91 = vmatpush1.msra.mxu0 %v37
    %92 = vmatprep.subr.mxu0 0.0
    %93 = vmatpush1.msra.mxu0 %v38
    %94 = vmatprep.subr.mxu0 0.0
    %95 = vmatpush1.msra.mxu0 %v39
    %96 = vmatprep.subr.mxu0 0.0
    %97 = vmatpush1.msra.mxu0 %v40
    %98 = vmatprep.subr.mxu0 0.0
    %99 = vmatpush1.msra.mxu0 0.0
    %100 = vmatprep.subr.mxu0 0.0
    %101 = vmatpush1.msra.mxu0 0.0
    %102 = vmatprep.subr.mxu0 0.0
    %103 = vmatpush1.msra.mxu0 0.0
    %104 = vmatprep.subr.mxu0 0.0
    %105 = vmatpush1.msra.mxu0 0.0
    %106 = vmatprep.subr.mxu0 0.0
    %107 = vmatpush1.msra.mxu0 0.0
    %108 = vmatprep.subr.mxu0 0.0
    %109 = vmatpush1.msra.mxu0 0.0
    %110 = vmatprep.subr.mxu0 0.0
    %111 = vmatpush1.msra.mxu0 0.0
    %112 = vmatprep.subr.mxu0 0.0
    %113 = vmatpush1.msra.mxu0 0.0
    %114 = vmatprep.subr.mxu0 0.0
    %115 = vmatpush1.msra.mxu0 0.0
    %116 = vmatprep.subr.mxu0 0.0
    %117 = vmatpush1.msra.mxu0 0.0
    %118 = vmatprep.subr.mxu0 0.0
    %119 = vmatpush1.msra.mxu0 0.0
    %120 = vmatprep.subr.mxu0 0.0
    %121 = vmatpush1.msra.mxu0 0.0
    %122 = vmatprep.subr.mxu0 0.0
    %123 = vmatpush1.msra.mxu0 0.0
    %124 = vmatprep.subr.mxu0 0.0
    %125 = vmatpush1.msra.mxu0 0.0
    %126 = vmatprep.subr.mxu0 0.0
    %127 = vmatpush1.msra.mxu0 0.0
    %128 = vmatprep.subr.mxu0 0.0
    %129 = vmatpush1.msra.mxu0 0.0
    %130 = vmatprep.subr.mxu0 0.0
    %131 = vmatpush1.msra.mxu0 0.0
    %132 = vmatprep.subr.mxu0 0.0
    %133 = vmatpush1.msra.mxu0 0.0
    %134 = vmatprep.subr.mxu0 0.0
    %135 = vmatpush1.msra.mxu0 0.0
    %136 = vmatprep.subr.mxu0 0.0
    %137 = vmatpush1.msra.mxu0 0.0
    %138 = vmatprep.subr.mxu0 0.0
    %139 = vmatpush1.msra.mxu0 0.0
    %140 = vmatprep.subr.mxu0 0.0
    %141 = vmatpush1.msra.mxu0 0.0
    %142 = vmatprep.subr.mxu0 0.0
    %143 = vmatpush1.msra.mxu0 0.0
    %144 = vmatprep.subr.mxu0 0.0
    %145 = vmatpush1.msra.mxu0 0.0
    %146 = vmatprep.subr.mxu0 0.0
    %147 = vmatpush1.msra.mxu0 0.0
    %148 = vmatprep.subr.mxu0 0.0
    %149 = vmatpush1.msra.mxu0 0.0
    %150 = vmatprep.subr.mxu0 0.0
    %151 = vmatpush1.msra.mxu0 0.0
    %152 = vmatprep.subr.mxu0 0.0
    %153 = vmatpush1.msra.mxu0 0.0
    %154 = vmatprep.mubr.f32.mxu0 0.0
    %155 = vmatmul.mubr.f32.gmra.mrb[0].mxu0 %v43
    %v156 = vpop.f32.mrb[0].mxu0
    %v157 = vadd.f32 0.0, %v156
    %v158 = vpop.f32.mrb[0].mxu0
    %159 = vmatprep.mubr.f32.mxu0 0.0
    %160 = vmatmul.mubr.f32.gmra.mrb[0].mxu0 %v46
    %v161 = vpop.f32.mrb[0].mxu0
    %v162 = vadd.f32 0.0, %v161
    %v163 = vpop.f32.mrb[0].mxu0
    %164 = vmatprep.mubr.f32.mxu0 0.0
    %165 = vmatmul.mubr.f32.gmra.mrb[0].mxu0 %v49
    %v166 = vpop.f32.mrb[0].mxu0
    %v167 = vadd.f32 0.0, %v166
    %v168 = vpop.f32.mrb[0].mxu0
    %169 = vmatprep.mubr.f32.mxu0 0.0
    %170 = vmatmul.mubr.f32.gmra.mrb[0].mxu0 %v52
    %v171 = vpop.f32.mrb[0].mxu0
    %v172 = vadd.f32 0.0, %v171
    %v173 = vpop.f32.mrb[0].mxu0
    %174 = vmatprep.mubr.f32.mxu0 0.0
    %175 = vmatmul.mubr.f32.gmra.mrb[0].mxu0 %v55
    %v176 = vpop.f32.mrb[0].mxu0
    %v177 = vadd.f32 0.0, %v176
    %v178 = vpop.f32.mrb[0].mxu0
    %179 = vmatprep.mubr.f32.mxu0 0.0
    %180 = vmatmul.mubr.f32.gmra.mrb[0].mxu0 %v58
    %v181 = vpop.f32.mrb[0].mxu0
    %v182 = vadd.f32 0.0, %v181
    %v183 = vpop.f32.mrb[0].mxu0
    %184 = vmatprep.mubr.f32.mxu0 0.0
    %185 = vmatmul.mubr.f32.gmra.mrb[0].mxu0 %v61
    %v186 = vpop.f32.mrb[0].mxu0
    %v187 = vadd.f32 0.0, %v186
    %v188 = vpop.f32.mrb[0].mxu0
    %189 = vmatprep.mubr.f32.mxu0 0.0
    %190 = vmatmul.mubr.f32.gmra.mrb[0].mxu0 %v64
    %v191 = vpop.f32.mrb[0].mxu0
    %v192 = vadd.f32 0.0, %v191
    %v193 = vpop.f32.mrb[0].mxu0
    %194 = vmatprep.mubr.f32.mxu0 0.0
    %195 = vmatmul.mubr.f32.gmra.mrb[0].mxu0 %v67
    %v196 = vpop.f32.mrb[0].mxu0
    %v197 = vadd.f32 0.0, %v196
    %v198 = vpop.f32.mrb[0].mxu0
    %199 = vmatprep.mubr.f32.mxu0 0.0
    %200 = vmatmul.mubr.f32.gmra.mrb[0].mxu0 %v70
    %v201 = vpop.f32.mrb[0].mxu0
    %v202 = vadd.f32 0.0, %v201
    %v203 = vpop.f32.mrb[0].mxu0
    %204 = vmatprep.mubr.f32.mxu0 0.0
    %205 = vmatmul.mubr.f32.gmra.mrb[0].mxu0 %v73
    %v206 = vpop.f32.mrb[0].mxu0
    %v207 = vadd.f32 0.0, %v206
    %v208 = vpop.f32.mrb[0].mxu0
    %209 = vmatprep.mubr.f32.mxu0 0.0
    %210 = vmatmul.mubr.f32.gmra.mrb[0].mxu0 %v76
    %v211 = vpop.f32.mrb[0].mxu0
    %v212 = vadd.f32 0.0, %v211
    %v213 = vpop.f32.mrb[0].mxu0
    %214 = vmatprep.mubr.f32.mxu0 0.0
    %215 = vmatmul.mubr.f32.gmra.mrb[0].mxu0 %v79
    %v216 = vpop.f32.mrb[0].mxu0
    %v217 = vadd.f32 0.0, %v216
    %v218 = vpop.f32.mrb[0].mxu0
    %219 = vmatprep.mubr.f32.mxu0 0.0
    %220 = vmatmul.mubr.f32.gmra.mrb[0].mxu0 %v82
    %v221 = vpop.f32.mrb[0].mxu0
    %v222 = vadd.f32 0.0, %v221
    %v223 = vpop.f32.mrb[0].mxu0
    %224 = vmatprep.mubr.f32.mxu0 0.0
    %225 = vmatmul.mubr.f32.gmra.mrb[0].mxu0 %v85
    %v226 = vpop.f32.mrb[0].mxu0
    %v227 = vadd.f32 0.0, %v226
    %v228 = vpop.f32.mrb[0].mxu0
    %229 = vmatprep.mubr.f32.mxu0 0.0
    %230 = vmatmul.mubr.f32.gmra.mrb[0].mxu0 %v88
    %v231 = vpop.f32.mrb[0].mxu0
    %v232 = vadd.f32 0.0, %v231
    %v233 = vpop.f32.mrb[0].mxu0
    %234 = vdwg.mxu0
    %v235 = vld [vmem:[%s2] sm:$0xff]
    %v236 = vld [vmem:[%s2 + $0x8] sm:$0xff]
    %v237 = vld [vmem:[%s2 + $0x10] sm:$0xff]
    %v238 = vld [vmem:[%s2 + $0x18] sm:$0xff]
    %v239 = vld [vmem:[%s3] sm:$0x1]
    %v241 = vlaneseq
    %v242 = vshrl.u32 %v241, 7
    %v243 = vsub.s32 0, %v242
    %v244 = vrot.slane %v239, %v243
    %246 = vmatprep.subr.mxu0 0.0
    %247 = vmatpush1.msra.mxu0 %v235
    %248 = vmatprep.subr.mxu0 0.0
    %249 = vmatpush1.msra.mxu0 %v236
    %250 = vmatprep.subr.mxu0 0.0
    %251 = vmatpush1.msra.mxu0 %v237
    %252 = vmatprep.subr.mxu0 0.0
    %253 = vmatpush1.msra.mxu0 %v238
    %254 = vmatprep.subr.mxu0 0.0
    %255 = vmatpush1.msra.mxu0 0.0
    %256 = vmatprep.subr.mxu0 0.0
    %257 = vmatpush1.msra.mxu0 0.0
    %258 = vmatprep.subr.mxu0 0.0
    %259 = vmatpush1.msra.mxu0 0.0
    %260 = vmatprep.subr.mxu0 0.0
    %261 = vmatpush1.msra.mxu0 0.0
    %262 = vmatprep.subr.mxu0 0.0
    %263 = vmatpush1.msra.mxu0 0.0
    %264 = vmatprep.subr.mxu0 0.0
    %265 = vmatpush1.msra.mxu0 0.0
    %266 = vmatprep.subr.mxu0 0.0
    %267 = vmatpush1.msra.mxu0 0.0
    %268 = vmatprep.subr.mxu0 0.0
    %269 = vmatpush1.msra.mxu0 0.0
    %270 = vmatprep.subr.mxu0 0.0
    %271 = vmatpush1.msra.mxu0 0.0
    %272 = vmatprep.subr.mxu0 0.0
    %273 = vmatpush1.msra.mxu0 0.0
    %274 = vmatprep.subr.mxu0 0.0
    %275 = vmatpush1.msra.mxu0 0.0
    %276 = vmatprep.subr.mxu0 0.0
    %277 = vmatpush1.msra.mxu0 0.0
    %278 = vmatprep.subr.mxu0 0.0
    %279 = vmatpush1.msra.mxu0 0.0
    %280 = vmatprep.subr.mxu0 0.0
    %281 = vmatpush1.msra.mxu0 0.0
    %282 = vmatprep.subr.mxu0 0.0
    %283 = vmatpush1.msra.mxu0 0.0
    %284 = vmatprep.subr.mxu0 0.0
    %285 = vmatpush1.msra.mxu0 0.0
    %286 = vmatprep.subr.mxu0 0.0
    %287 = vmatpush1.msra.mxu0 0.0
    %288 = vmatprep.subr.mxu0 0.0
    %289 = vmatpush1.msra.mxu0 0.0
    %290 = vmatprep.subr.mxu0 0.0
    %291 = vmatpush1.msra.mxu0 0.0
    %292 = vmatprep.subr.mxu0 0.0
    %293 = vmatpush1.msra.mxu0 0.0
    %294 = vmatprep.subr.mxu0 0.0
    %295 = vmatpush1.msra.mxu0 0.0
    %296 = vmatprep.subr.mxu0 0.0
    %297 = vmatpush1.msra.mxu0 0.0
    %298 = vmatprep.subr.mxu0 0.0
    %299 = vmatpush1.msra.mxu0 0.0
    %300 = vmatprep.subr.mxu0 0.0
    %301 = vmatpush1.msra.mxu0 0.0
    %302 = vmatprep.subr.mxu0 0.0
    %303 = vmatpush1.msra.mxu0 0.0
    %304 = vmatprep.subr.mxu0 0.0
    %305 = vmatpush1.msra.mxu0 0.0
    %306 = vmatprep.subr.mxu0 0.0
    %307 = vmatpush1.msra.mxu0 0.0
    %308 = vmatprep.subr.mxu0 0.0
    %309 = vmatpush1.msra.mxu0 0.0
    %310 = vmatprep.mubr.f32.mxu0 0.0
    %311 = vmatmul.mubr.f32.gmra.mrb[0].mxu0 %v43
    %v312 = vpop.f32.mrb[0].mxu0
    %v313 = vadd.f32 %v244, %v312
    %v314 = vpop.f32.mrb[0].mxu0
    %315 = vmatprep.mubr.f32.mxu0 0.0
    %316 = vmatmul.mubr.f32.gmra.mrb[0].mxu0 %v46
    %v317 = vpop.f32.mrb[0].mxu0
    %v318 = vadd.f32 %v244, %v317
    %v319 = vpop.f32.mrb[0].mxu0
    %320 = vmatprep.mubr.f32.mxu0 0.0
    %321 = vmatmul.mubr.f32.gmra.mrb[0].mxu0 %v49
    %v322 = vpop.f32.mrb[0].mxu0
    %v323 = vadd.f32 %v244, %v322
    %v324 = vpop.f32.mrb[0].mxu0
    %325 = vmatprep.mubr.f32.mxu0 0.0
    %326 = vmatmul.mubr.f32.gmra.mrb[0].mxu0 %v52
    %v327 = vpop.f32.mrb[0].mxu0
    %v328 = vadd.f32 %v244, %v327
    %v329 = vpop.f32.mrb[0].mxu0
    %330 = vmatprep.mubr.f32.mxu0 0.0
    %331 = vmatmul.mubr.f32.gmra.mrb[0].mxu0 %v55
    %v332 = vpop.f32.mrb[0].mxu0
    %v333 = vadd.f32 %v244, %v332
    %v334 = vpop.f32.mrb[0].mxu0
    %335 = vmatprep.mubr.f32.mxu0 0.0
    %336 = vmatmul.mubr.f32.gmra.mrb[0].mxu0 %v58
    %v337 = vpop.f32.mrb[0].mxu0
    %v338 = vadd.f32 %v244, %v337
    %v339 = vpop.f32.mrb[0].mxu0
    %340 = vmatprep.mubr.f32.mxu0 0.0
    %341 = vmatmul.mubr.f32.gmra.mrb[0].mxu0 %v61
    %v342 = vpop.f32.mrb[0].mxu0
    %v343 = vadd.f32 %v244, %v342
    %v344 = vpop.f32.mrb[0].mxu0
    %345 = vmatprep.mubr.f32.mxu0 0.0
    %346 = vmatmul.mubr.f32.gmra.mrb[0].mxu0 %v64
    %v347 = vpop.f32.mrb[0].mxu0
    %v348 = vadd.f32 %v244, %v347
    %v349 = vpop.f32.mrb[0].mxu0
    %350 = vmatprep.mubr.f32.mxu0 0.0
    %351 = vmatmul.mubr.f32.gmra.mrb[0].mxu0 %v67
    %v352 = vpop.f32.mrb[0].mxu0
    %v353 = vadd.f32 %v244, %v352
    %v354 = vpop.f32.mrb[0].mxu0
    %355 = vmatprep.mubr.f32.mxu0 0.0
    %356 = vmatmul.mubr.f32.gmra.mrb[0].mxu0 %v70
    %v357 = vpop.f32.mrb[0].mxu0
    %v358 = vadd.f32 %v244, %v357
    %v359 = vpop.f32.mrb[0].mxu0
    %360 = vmatprep.mubr.f32.mxu0 0.0
    %361 = vmatmul.mubr.f32.gmra.mrb[0].mxu0 %v73
    %v362 = vpop.f32.mrb[0].mxu0
    %v363 = vadd.f32 %v244, %v362
    %v364 = vpop.f32.mrb[0].mxu0
    %365 = vmatprep.mubr.f32.mxu0 0.0
    %366 = vmatmul.mubr.f32.gmra.mrb[0].mxu0 %v76
    %v367 = vpop.f32.mrb[0].mxu0
    %v368 = vadd.f32 %v244, %v367
    %v369 = vpop.f32.mrb[0].mxu0
    %370 = vmatprep.mubr.f32.mxu0 0.0
    %371 = vmatmul.mubr.f32.gmra.mrb[0].mxu0 %v79
    %v372 = vpop.f32.mrb[0].mxu0
    %v373 = vadd.f32 %v244, %v372
    %v374 = vpop.f32.mrb[0].mxu0
    %375 = vmatprep.mubr.f32.mxu0 0.0
    %376 = vmatmul.mubr.f32.gmra.mrb[0].mxu0 %v82
    %v377 = vpop.f32.mrb[0].mxu0
    %v378 = vadd.f32 %v244, %v377
    %v379 = vpop.f32.mrb[0].mxu0
    %380 = vmatprep.mubr.f32.mxu0 0.0
    %381 = vmatmul.mubr.f32.gmra.mrb[0].mxu0 %v85
    %v382 = vpop.f32.mrb[0].mxu0
    %v383 = vadd.f32 %v244, %v382
    %v384 = vpop.f32.mrb[0].mxu0
    %385 = vmatprep.mubr.f32.mxu0 0.0
    %386 = vmatmul.mubr.f32.gmra.mrb[0].mxu0 %v88
    %v387 = vpop.f32.mrb[0].mxu0
    %v388 = vadd.f32 %v244, %v387
    %v389 = vpop.f32.mrb[0].mxu0
    %390 = vdwg.mxu0
    %v391 = vpack.c.bf16 %v162, %v157
    %v392 = vpack.c.bf16 %v172, %v167
    %v393 = vpack.c.bf16 %v182, %v177
    %v394 = vpack.c.bf16 %v192, %v187
    %v395 = vpack.c.bf16 %v202, %v197
    %v396 = vpack.c.bf16 %v212, %v207
    %v397 = vpack.c.bf16 %v222, %v217
    %v398 = vpack.c.bf16 %v232, %v227
    %v407 = vunpack.c.l.b16 %v391
    %v408 = vunpack.c.h.b16 %v391
    %v409 = vunpack.c.l.b16 %v392
    %v410 = vunpack.c.h.b16 %v392
    %v411 = vunpack.c.l.b16 %v393
    %v412 = vunpack.c.h.b16 %v393
    %v413 = vunpack.c.l.b16 %v394
    %v414 = vunpack.c.h.b16 %v394
    %v415 = vunpack.c.l.b16 %v395
    %v416 = vunpack.c.h.b16 %v395
    %v417 = vunpack.c.l.b16 %v396
    %v418 = vunpack.c.h.b16 %v396
    %v419 = vunpack.c.l.b16 %v397
    %v420 = vunpack.c.h.b16 %v397
    %v421 = vunpack.c.l.b16 %v398
    %v422 = vunpack.c.h.b16 %v398
    %v423 = vpack.c.b16 %v407, %v407
    %v424 = vpack.c.b16 %v408, %v408
    %v425 = vpack.c.b16 %v409, %v409
    %v426 = vpack.c.b16 %v410, %v410
    %v427 = vpack.c.b16 %v411, %v411
    %v428 = vpack.c.b16 %v412, %v412
    %v429 = vpack.c.b16 %v413, %v413
    %v430 = vpack.c.b16 %v414, %v414
    %v431 = vpack.c.b16 %v415, %v415
    %v432 = vpack.c.b16 %v416, %v416
    %v433 = vpack.c.b16 %v417, %v417
    %v434 = vpack.c.b16 %v418, %v418
    %v435 = vpack.c.b16 %v419, %v419
    %v436 = vpack.c.b16 %v420, %v420
    %v437 = vpack.c.b16 %v421, %v421
    %v438 = vpack.c.b16 %v422, %v422
    %455 = vst [vmem:[#allocation2] sm:$0xf] %v423
    %456 = vst [vmem:[#allocation2 + $0x4] sm:$0xf] %v424
    %457 = vst [vmem:[#allocation2 + $0x8] sm:$0xf] %v425
    %458 = vst [vmem:[#allocation2 + $0xc] sm:$0xf] %v426
    %459 = vst [vmem:[#allocation2 + $0x10] sm:$0xf] %v427
    %460 = vst [vmem:[#allocation2 + $0x14] sm:$0xf] %v428
    %461 = vst [vmem:[#allocation2 + $0x18] sm:$0xf] %v429
    %462 = vst [vmem:[#allocation2 + $0x1c] sm:$0xf] %v430
    %463 = vst [vmem:[#allocation2 + $0x20] sm:$0xf] %v431
    %464 = vst [vmem:[#allocation2 + $0x24] sm:$0xf] %v432
    %465 = vst [vmem:[#allocation2 + $0x28] sm:$0xf] %v433
    %466 = vst [vmem:[#allocation2 + $0x2c] sm:$0xf] %v434
    %467 = vst [vmem:[#allocation2 + $0x30] sm:$0xf] %v435
    %468 = vst [vmem:[#allocation2 + $0x34] sm:$0xf] %v436
    %469 = vst [vmem:[#allocation2 + $0x38] sm:$0xf] %v437
    %470 = vst [vmem:[#allocation2 + $0x3c] sm:$0xf] %v438
    %471 = vst [vmem:[#allocation4] sm:$0xff] %v313
    %472 = vst [vmem:[#allocation4 + $0x8] sm:$0xff] %v318
    %473 = vst [vmem:[#allocation4 + $0x10] sm:$0xff] %v323
    %474 = vst [vmem:[#allocation4 + $0x18] sm:$0xff] %v328
    %475 = vst [vmem:[#allocation4 + $0x20] sm:$0xff] %v333
    %476 = vst [vmem:[#allocation4 + $0x28] sm:$0xff] %v338
    %477 = vst [vmem:[#allocation4 + $0x30] sm:$0xff] %v343
    %478 = vst [vmem:[#allocation4 + $0x38] sm:$0xff] %v348
    %479 = vst [vmem:[#allocation4 + $0x40] sm:$0xff] %v353
    %480 = vst [vmem:[#allocation4 + $0x48] sm:$0xff] %v358
    %481 = vst [vmem:[#allocation4 + $0x50] sm:$0xff] %v363
    %482 = vst [vmem:[#allocation4 + $0x58] sm:$0xff] %v368
    %483 = vst [vmem:[#allocation4 + $0x60] sm:$0xff] %v373
    %484 = vst [vmem:[#allocation4 + $0x68] sm:$0xff] %v378
    %485 = vst [vmem:[#allocation4 + $0x70] sm:$0xff] %v383
    %486 = vst [vmem:[#allocation4 + $0x78] sm:$0xff] %v388
    // Predicated region
    $region18: #{tpu_custom_call.1} parent=1 // pred_check
      _
    $region19: #{tpu_custom_call.1} parent=1 // pred_check_branch
      %488 = sbr.rel (0) target = $region21
    $region20: #{tpu_custom_call.1} parent=1 // pred_region
      %s490 = ssub.s32 1024, 1024
      %491 = vsyncadd [#allocation3], %s490
      %s492 = sshll.u32 [#allocation2], 4
      %s493 = int_to_ptr.vmem [resolvable:$true] %s492
      %498 = dma.vmem_to_hbm [thread:$0]  %s493, 1024, %s4, [#allocation3], 64, 64, 4
    $region21: #{tpu_custom_call.1} parent=1 // pred_fallthru
      _
    // Predicated region
    $region22: #{tpu_custom_call.1} parent=1 // pred_check
      _
    $region23: #{tpu_custom_call.1} parent=1 // pred_check_branch
      %500 = sbr.rel (0) target = $region25
    $region24: #{tpu_custom_call.1} parent=1 // pred_region
      %s502 = ssub.s32 2048, 2048
      %503 = vsyncadd [#allocation5], %s502
      %s504 = sshll.u32 [#allocation4], 4
      %s505 = int_to_ptr.vmem [resolvable:$true] %s504
      %510 = dma.vmem_to_hbm [thread:$0]  %s505, 2048, %s5, [#allocation5], 128, 128, 8
    $region25: #{tpu_custom_call.1} parent=1 // pred_fallthru
      _
    // Predicated region
    $region26: #{tpu_custom_call.1} parent=1 // pred_check
      _
    $region27: #{tpu_custom_call.1} parent=1 // pred_check_branch
      %512 = sbr.rel (0) target = $region29
    $region28: #{tpu_custom_call.1} parent=1 // pred_region
      %513 = dma.done [#allocation3], 1024
    $region29: #{tpu_custom_call.1} parent=1 // pred_fallthru
      _
    // Predicated region
    $region30: #{tpu_custom_call.1} parent=1 // pred_check
      _
    $region31: #{tpu_custom_call.1} parent=1 // pred_check_branch
      %515 = sbr.rel (0) target = $region33
    $region32: #{tpu_custom_call.1} parent=1 // pred_region
      %516 = dma.done [#allocation5], 2048
    $region33: #{tpu_custom_call.1} parent=1 // pred_fallthru
      _
    %517 = vsyncpa [#allocation3], 1
    %518 = vsyncpa [#allocation5], 1

</llo_original>
